<compile_context>
chip_gen: v5e
topology: v5e:2x2
jax: 0.10.0
libtpu: 0.0.40
codegen_flags: <defaults>
</compile_context>

<pallas_src>
import functools

import jax
import jax.numpy as jnp
from jax.experimental import pallas as pl
from jax.experimental.pallas import tpu as pltpu

_LANE = 128


def _round_up(x, m):
    return ((x + m - 1) // m) * m


# --------------------------------------------------------------------------
# Kernel 1 (pointwise hot path): softmax prob of the target class + weighted CE.
# Blocks: w (C, 1), x (1, C, T), t (1, 1, T)  ->  prob (1, 1, T), loss (1, 1, T)
# Class lives on the sublane axis, pixels on the lane axis (lane-dense outputs).
# --------------------------------------------------------------------------
def _ohem_pointwise_kernel(w_ref, x_ref, t_ref, prob_ref, loss_ref, *, ignore_index):
    x = x_ref[0].astype(jnp.float32)                        # (C, T) logits
    t = t_ref[0]                                            # (1, T) int32 targets
    valid = t != ignore_index                               # (1, T)
    tt = jnp.where(valid, t, 0)                             # ignore -> class 0 for gather

    cls = jax.lax.broadcasted_iota(jnp.int32, x.shape, 0)   # (C, T)
    onehot = (cls == tt).astype(jnp.float32)                # (C, T)

    m = jnp.max(x, axis=0, keepdims=True)                   # (1, T) sublane reduce
    s = jnp.sum(jnp.exp(x - m), axis=0, keepdims=True)      # (1, T)

    x_g = jnp.sum(x * onehot, axis=0, keepdims=True)        # (1, T) target-class logit
    log_sm_g = (x_g - m) - jnp.log(s)                       # (1, T) log-softmax @ target
    prob_g = jnp.exp(log_sm_g)                              # (1, T) softmax prob (EUP)

    w_g = jnp.sum(w_ref[...] * onehot, axis=0, keepdims=True)   # (1, T) class weight

    # invalid / padded pixels: prob = +inf (never selected by `prob < thr`), loss = 0
    prob_ref[0] = jnp.where(valid, prob_g, jnp.inf)
    loss_ref[0] = jnp.where(valid, -w_g * log_sm_g, 0.0)


# --------------------------------------------------------------------------
# Kernel 2 (select-reduce): partial sum / count of losses whose target-class
# probability is below the OHEM threshold.
# Grid: (pixel tiles [parallel], batch [arbitrary accumulation]).
# Each pixel tile owns its own lane-dense (1, 8, 128) partial-output block, so the
# parallel axis can be split across TensorCores without racing an accumulator.
# --------------------------------------------------------------------------
def _select_reduce_kernel(thr_ref, prob_ref, loss_ref, sum_ref, cnt_ref):
    @pl.when(pl.program_id(1) == 0)
    def _():
        sum_ref[...] = jnp.zeros_like(sum_ref)
        cnt_ref[...] = jnp.zeros_like(cnt_ref)

    thr = thr_ref[0]
    prob = prob_ref[0]                                      # (1, T2)
    sel = prob < thr                                        # invalid pixels have prob=+inf
    s = jnp.sum(jnp.where(sel, loss_ref[0], 0.0))
    c = jnp.sum(sel.astype(jnp.float32))
    sum_ref[...] = sum_ref[...] + s                         # scalar broadcast over block
    cnt_ref[...] = cnt_ref[...] + c


# --------------------------------------------------------------------------
# Nearest-neighbor target rescaling (matches F.interpolate(mode='nearest'))
# --------------------------------------------------------------------------
def _scale_target_nearest(target, size):
    _, ht, wt = target.shape
    h, w = size
    if (ht, wt) == (h, w):
        return target
    ih = jnp.minimum((jnp.arange(h) * ht) // h, ht - 1)
    iw = jnp.minimum((jnp.arange(w) * wt) // w, wt - 1)
    return target[:, ih[:, None], iw[None, :]]


def _pick_tiles(hw, c):
    """Pixel-tile sizes (multiples of 128, dividing the padded pixel count).

    Kernel 1 targets ~1 MiB of logits per grid step (so per-step DMA dwarfs the
    ~0.35 us grid overhead); kernel 2 streams only 2 f32 arrays, so it uses a
    larger tile (a multiple of kernel 1's tile)."""
    hw128 = _round_up(hw, _LANE)
    t1 = max(512, min(32768, (1 << 20) // (4 * c)))
    t1 = max(_LANE, (t1 // _LANE) * _LANE)
    t1 = min(t1, hw128)
    m = max(1, (1 << 17) // t1)                 # ~128K pixels per kernel-2 step
    t2 = min(t1 * m, _round_up(hw, t1))         # multiple of t1 by construction
    return t1, t2


# --------------------------------------------------------------------------
# Wrapper
# --------------------------------------------------------------------------
def ohem_ce_loss(predict, target, *, weight, thresh=0.7, min_kept=1,
                 ignore_index=-100, reduction="mean"):
    if reduction not in ("mean", "sum"):
        raise NotImplementedError("Reduction Error!")

    n, c, h, w = predict.shape
    min_kept = max(1, min_kept)
    batch_kept = min_kept * n
    hw = h * w

    target = _scale_target_nearest(target, (h, w)).astype(jnp.int32)

    tile1, tile2 = _pick_tiles(hw, c)
    hw_pad = _round_up(hw, tile2)
    n_tiles1 = hw_pad // tile1
    n_tiles2 = hw_pad // tile2

    # Class-major / pixel-on-lane views (free reshapes).  Logits keep their input
    # dtype (e.g. bf16) and are cast to f32 inside the kernel.
    x = predict.reshape(n, c, hw)
    t = target.reshape(n, 1, hw)
    pad = hw_pad - hw
    if pad:
        x = jnp.pad(x, ((0, 0), (0, 0), (0, pad)))
        t = jnp.pad(t, ((0, 0), (0, 0), (0, pad)), constant_values=ignore_index)

    w_col = jnp.asarray(weight, jnp.float32).reshape(c, 1)

    k1 = functools.partial(_ohem_pointwise_kernel, ignore_index=ignore_index)
    prob, loss = pl.pallas_call(
        k1,
        out_shape=(jax.ShapeDtypeStruct((n, 1, hw_pad), jnp.float32),
                   jax.ShapeDtypeStruct((n, 1, hw_pad), jnp.float32)),
        grid_spec=pltpu.PrefetchScalarGridSpec(
            num_scalar_prefetch=0,
            grid=(n_tiles1, n),
            in_specs=[pl.BlockSpec((c, 1), lambda i, b: (0, 0)),          # weights stay resident
                      pl.BlockSpec((1, c, tile1), lambda i, b: (b, 0, i)),
                      pl.BlockSpec((1, 1, tile1), lambda i, b: (b, 0, i))],
            out_specs=[pl.BlockSpec((1, 1, tile1), lambda i, b: (b, 0, i)),
                       pl.BlockSpec((1, 1, tile1), lambda i, b: (b, 0, i))]),
        compiler_params=pltpu.CompilerParams(
            dimension_semantics=("parallel", "parallel"),
            vmem_limit_bytes=32 * 1024 * 1024),
    )(w_col, x, t)

    # ---- OHEM threshold (tiny, data-dependent global op kept in plain JAX) ----
    # TODO(synk): the global k-th-smallest probability has no clean single-kernel
    # Pallas equivalent; it is computed with lax.top_k (cheap since batch_kept << P).
    num_valid = jnp.sum(t != ignore_index).astype(jnp.int32)
    p_flat = prob.reshape(-1)                      # padded/invalid entries are +inf
    k = int(min(batch_kept + 1, p_flat.shape[0]))
    neg_smallest, _ = jax.lax.top_k(-p_flat, k)    # k smallest probs, ascending (negated)
    smallest = -neg_smallest
    idx = jnp.clip(jnp.minimum(jnp.int32(batch_kept), num_valid - 1), 0, k - 1)
    min_threshold = jnp.where(num_valid > 0, smallest[idx], jnp.float32(0.0))
    threshold = jnp.maximum(min_threshold, jnp.float32(thresh)).reshape(1)

    # ---- select + reduce ----
    sum_parts, cnt_parts = pl.pallas_call(
        _select_reduce_kernel,
        out_shape=(jax.ShapeDtypeStruct((n_tiles2, 8, _LANE), jnp.float32),
                   jax.ShapeDtypeStruct((n_tiles2, 8, _LANE), jnp.float32)),
        grid_spec=pltpu.PrefetchScalarGridSpec(
            num_scalar_prefetch=1,
            grid=(n_tiles2, n),
            in_specs=[pl.BlockSpec((1, 1, tile2), lambda i, b, thr: (b, 0, i)),
                      pl.BlockSpec((1, 1, tile2), lambda i, b, thr: (b, 0, i))],
            out_specs=[pl.BlockSpec((1, 8, _LANE), lambda i, b, thr: (i, 0, 0)),
                       pl.BlockSpec((1, 8, _LANE), lambda i, b, thr: (i, 0, 0))]),
        compiler_params=pltpu.CompilerParams(
            dimension_semantics=("parallel", "arbitrary"),
            vmem_limit_bytes=32 * 1024 * 1024),
    )(threshold, prob, loss)

    total = jnp.sum(sum_parts[:, 0, 0])
    count = jnp.sum(cnt_parts[:, 0, 0])

    if reduction == "sum":
        return total
    # 'mean': empty selection -> sum of the (empty) selection, i.e. 0, as in PyTorch.
    return jnp.where(count > 0, total / count, total)


# --------------------------------------------------------------------------
# Pure-JAX reference (sanity check only)
# --------------------------------------------------------------------------
def _ohem_ce_loss_ref(predict, target, *, weight, thresh, min_kept,
                      ignore_index, reduction="mean"):
    n, c, h, w = predict.shape
    batch_kept = max(1, min_kept) * n
    target = _scale_target_nearest(target, (h, w)).astype(jnp.int32).reshape(-1)
    x = jnp.transpose(predict, (0, 2, 3, 1)).reshape(-1, c).astype(jnp.float32)
    valid = target != ignore_index
    tt = jnp.where(valid, target, 0)
    logp = jax.nn.log_softmax(x, axis=-1)
    prob = jnp.take_along_axis(jax.nn.softmax(x, axis=-1), tt[:, None], axis=1)[:, 0]
    loss = -weight[tt] * jnp.take_along_axis(logp, tt[:, None], axis=1)[:, 0]
    loss = jnp.where(valid, loss, 0.0)
    num_valid = jnp.sum(valid)
    sorted_prob = jnp.sort(jnp.where(valid, prob, jnp.inf))
    idx = jnp.minimum(batch_kept, jnp.maximum(num_valid - 1, 0))
    min_thr = jnp.where(num_valid > 0, sorted_prob[idx], 0.0)
    threshold = jnp.maximum(min_thr, thresh)
    sel = valid & (prob < threshold)
    total = jnp.sum(jnp.where(sel, loss, 0.0))
    count = jnp.sum(sel)
    if reduction == "sum":
        return total
    return jnp.where(count > 0, total / count, total)


if __name__ == "__main__":
    key = jax.random.PRNGKey(0)
    k1, k2, k3 = jax.random.split(key, 3)

    N, C, H, W = 2, 4, 16, 16
    IGNORE = 255
    THRESH = 0.7
    MIN_KEPT = 10

    predict = jax.random.normal(k1, (N, C, H, W), dtype=jnp.float32)
    target = jax.random.randint(k2, (N, H, W), 0, C, dtype=jnp.int32)
    ignore_mask = jax.random.uniform(k3, (N, H, W)) < 0.1
    target = jnp.where(ignore_mask, IGNORE, target)

    # deterministic per-class weights (the module's optional `weight` tensor)
    weight = jnp.array([1.0, 0.5, 2.0, 1.25], dtype=jnp.float32)

    out = ohem_ce_loss(predict, target, weight=weight, thresh=THRESH,
                       min_kept=MIN_KEPT, ignore_index=IGNORE, reduction="mean")
    out = jax.block_until_ready(out)

    ref = _ohem_ce_loss_ref(predict, target, weight=weight, thresh=THRESH,
                            min_kept=MIN_KEPT, ignore_index=IGNORE, reduction="mean")
    ref = jax.block_until_ready(ref)

    assert jnp.isfinite(out), "non-finite loss"
    assert jnp.allclose(out, ref, atol=1e-4, rtol=1e-4), (out, ref)
    print("KERNEL_OK")
</pallas_src>

<mosaic_0001>
module attributes {stable_mosaic.version = 11 : i64} {
  func.func @_ohem_pointwise_kernel(%arg0: i32, %arg1: i32, %arg2: memref<4x1xf32, #tpu.memory_space<vmem>>, %arg3: memref<1x4x256xf32, #tpu.memory_space<vmem>>, %arg4: memref<1x1x256xi32, #tpu.memory_space<vmem>>, %arg5: memref<1x1x256xf32, #tpu.memory_space<vmem>>, %arg6: memref<1x1x256xf32, #tpu.memory_space<vmem>>) attributes {dimension_semantics = [#tpu.dimension_semantics<parallel>, #tpu.dimension_semantics<parallel>], iteration_bounds = array<i64: 1, 2>, scalar_prefetch = 0 : i64, scratch_operands = 0 : i64, tpu.core_type = #tpu.core_type<tc>, window_params = [{pipeline_mode = #tpu.pipeline_mode<synchronous>, transform_indices = @transform_0, window_bounds = array<i64: 4, 1>}, {transform_indices = @transform_1, window_bounds = array<i64: 1, 4, 256>}, {transform_indices = @transform_2, window_bounds = array<i64: 1, 1, 256>}, {transform_indices = @transform_3, window_bounds = array<i64: 1, 1, 256>}, {transform_indices = @transform_4, window_bounds = array<i64: 1, 1, 256>}]} {
    %c0 = arith.constant 0 : index
    %c0_0 = arith.constant 0 : index
    %c0_1 = arith.constant 0 : index
    %0 = vector.load %arg3[%c0, %c0_0, %c0_1] : memref<1x4x256xf32, #tpu.memory_space<vmem>>, vector<1x4x256xf32>
    %1 = vector.shape_cast %0 : vector<1x4x256xf32> to vector<4x256xf32>
    %c0_2 = arith.constant 0 : index
    %c0_3 = arith.constant 0 : index
    %c0_4 = arith.constant 0 : index
    %2 = vector.load %arg4[%c0_2, %c0_3, %c0_4] : memref<1x1x256xi32, #tpu.memory_space<vmem>>, vector<1x1x256xi32>
    %3 = vector.shape_cast %2 : vector<1x1x256xi32> to vector<1x256xi32>
    %c255_i32 = arith.constant 255 : i32
    %4 = vector.broadcast %c255_i32 : i32 to vector<1x256xi32>
    %5 = arith.cmpi ne, %3, %4 : vector<1x256xi32>
    %c0_i32 = arith.constant 0 : i32
    %6 = vector.broadcast %c0_i32 : i32 to vector<1x256xi32>
    %7 = arith.select %5, %3, %6 : vector<1x256xi1>, vector<1x256xi32>
    %8 = tpu.iota {dimensions = array<i32: 0>} : vector<4x256xi32>
    %9 = vector.broadcast %7 : vector<1x256xi32> to vector<4x256xi32>
    %10 = arith.cmpi eq, %8, %9 : vector<4x256xi32>
    %11 = arith.extui %10 : vector<4x256xi1> to vector<4x256xi32>
    %12 = arith.sitofp %11 : vector<4x256xi32> to vector<4x256xf32>
    %cst = arith.constant dense<0xFF800000> : vector<256xf32>
    %13 = vector.multi_reduction <maximumf>, %1, %cst [0] : vector<4x256xf32> to vector<256xf32>
    %14 = vector.shape_cast %13 : vector<256xf32> to vector<1x256xf32>
    %15 = vector.broadcast %14 : vector<1x256xf32> to vector<4x256xf32>
    %16 = arith.subf %1, %15 : vector<4x256xf32>
    %17 = math.exp %16 : vector<4x256xf32>
    %cst_5 = arith.constant dense<0.000000e+00> : vector<256xf32>
    %18 = vector.multi_reduction <add>, %17, %cst_5 [0] : vector<4x256xf32> to vector<256xf32>
    %19 = vector.shape_cast %18 : vector<256xf32> to vector<1x256xf32>
    %20 = arith.mulf %1, %12 : vector<4x256xf32>
    %cst_6 = arith.constant dense<0.000000e+00> : vector<256xf32>
    %21 = vector.multi_reduction <add>, %20, %cst_6 [0] : vector<4x256xf32> to vector<256xf32>
    %22 = vector.shape_cast %21 : vector<256xf32> to vector<1x256xf32>
    %23 = arith.subf %22, %14 : vector<1x256xf32>
    %24 = math.log %19 : vector<1x256xf32>
    %25 = arith.subf %23, %24 : vector<1x256xf32>
    %26 = math.exp %25 : vector<1x256xf32>
    %c0_7 = arith.constant 0 : index
    %c0_8 = arith.constant 0 : index
    %27 = vector.load %arg2[%c0_7, %c0_8] : memref<4x1xf32, #tpu.memory_space<vmem>>, vector<4x1xf32>
    %28 = vector.broadcast %27 : vector<4x1xf32> to vector<4x256xf32>
    %29 = arith.mulf %28, %12 : vector<4x256xf32>
    %cst_9 = arith.constant dense<0.000000e+00> : vector<256xf32>
    %30 = vector.multi_reduction <add>, %29, %cst_9 [0] : vector<4x256xf32> to vector<256xf32>
    %31 = vector.shape_cast %30 : vector<256xf32> to vector<1x256xf32>
    %cst_10 = arith.constant 0x7F800000 : f32
    %32 = vector.broadcast %cst_10 : f32 to vector<1x256xf32>
    %33 = arith.select %5, %26, %32 : vector<1x256xi1>, vector<1x256xf32>
    %c0_11 = arith.constant 0 : index
    %c0_12 = arith.constant 0 : index
    %c0_13 = arith.constant 0 : index
    %34 = vector.load %arg5[%c0_11, %c0_12, %c0_13] : memref<1x1x256xf32, #tpu.memory_space<vmem>>, vector<1x1x256xf32>
    %35 = vector.shape_cast %34 : vector<1x1x256xf32> to vector<1x256xf32>
    %36 = vector.shape_cast %33 : vector<1x256xf32> to vector<1x1x256xf32>
    tpu.vector_store %arg5[%c0_11, %c0_12, %c0_13], %36 {strides = array<i32>} : memref<1x1x256xf32, #tpu.memory_space<vmem>>, vector<1x1x256xf32>,
    %cst_14 = arith.constant 0.000000e+00 : f32
    %37 = vector.broadcast %cst_14 : f32 to vector<1x256xf32>
    %38 = arith.subf %37, %31 : vector<1x256xf32>
    %39 = arith.mulf %38, %25 : vector<1x256xf32>
    %cst_15 = arith.constant 0.000000e+00 : f32
    %40 = vector.broadcast %cst_15 : f32 to vector<1x256xf32>
    %41 = arith.select %5, %39, %40 : vector<1x256xi1>, vector<1x256xf32>
    %c0_16 = arith.constant 0 : index
    %c0_17 = arith.constant 0 : index
    %c0_18 = arith.constant 0 : index
    %42 = vector.load %arg6[%c0_16, %c0_17, %c0_18] : memref<1x1x256xf32, #tpu.memory_space<vmem>>, vector<1x1x256xf32>
    %43 = vector.shape_cast %42 : vector<1x1x256xf32> to vector<1x256xf32>
    %44 = vector.shape_cast %41 : vector<1x256xf32> to vector<1x1x256xf32>
    tpu.vector_store %arg6[%c0_16, %c0_17, %c0_18], %44 {strides = array<i32>} : memref<1x1x256xf32, #tpu.memory_space<vmem>>, vector<1x1x256xf32>,
    return
  }
  func.func @transform_0(%arg0: i32, %arg1: i32) -> (i32, i32) {
    %c0_i32 = arith.constant 0 : i32
    %c0_i32_0 = arith.constant 0 : i32
    %c0_i32_1 = arith.constant 0 : i32
    return %c0_i32, %c0_i32_0 : i32, i32
  }
  func.func @transform_1(%arg0: i32, %arg1: i32) -> (i32, i32, i32) {
    %c0_i32 = arith.constant 0 : i32
    %c0_i32_0 = arith.constant 0 : i32
    return %arg1, %c0_i32, %arg0 : i32, i32, i32
  }
  func.func @transform_2(%arg0: i32, %arg1: i32) -> (i32, i32, i32) {
    %c0_i32 = arith.constant 0 : i32
    %c0_i32_0 = arith.constant 0 : i32
    return %arg1, %c0_i32, %arg0 : i32, i32, i32
  }
  func.func @transform_3(%arg0: i32, %arg1: i32) -> (i32, i32, i32) {
    %c0_i32 = arith.constant 0 : i32
    %c0_i32_0 = arith.constant 0 : i32
    return %arg1, %c0_i32, %arg0 : i32, i32, i32
  }
  func.func @transform_4(%arg0: i32, %arg1: i32) -> (i32, i32, i32) {
    %c0_i32 = arith.constant 0 : i32
    %c0_i32_0 = arith.constant 0 : i32
    return %arg1, %c0_i32, %arg0 : i32, i32, i32
  }
}

</mosaic_0001>

<llo_original>
// kernel: tpu_custom_call.1
$region0: #{tpu_custom_call.1}
  #allocation0 [shape = 'u32[]', space=smem, size = 0x4, offset = 0x4, fixed_abs, tag = 'smem constant byte address 0x4 - core index']
  #allocation1 [shape = 'u32[72,128]{1,0:T(1,128)}', space=vmem, size = 0x9000, scoped, tag = 'internal scratch']
  %s0 = inlined_call_operand.vmem [shape: f32[4,1], index: 0, kind: input, shape index: {}]
  %s1 = inlined_call_operand.hbm [shape: f32[2,4,256], index: 1, kind: input, shape index: {}]
  %s2 = inlined_call_operand.vmem [shape: s32[2,1,256], index: 2, kind: input, shape index: {}]
  %s3 = inlined_call_operand.hbm [shape: f32[2,1,256], index: 3, kind: output, shape index: {0}]
  %s4 = inlined_call_operand.hbm [shape: f32[2,1,256], index: 4, kind: output, shape index: {1}]
  %5 = xla_tuple %s3, %s4
  %s6 = sld [smem:[#allocation0]]
  $region57: #{tpu_custom_call.1} parent=0
    _
  %s8 = ssub.s32 1, %s6
  %s9 = scalar_select 0, %s8, %s6
  $region1: #{tpu_custom_call.1} parent=0
    #allocation2 [shape = 'u8[8192]{0}', space=vmem, size = 0x2000, scoped, tag = 'input window, operand 1']
    #allocation3 [shape = 's32[2]{0}', space=sflag, size = 0x8, scoped, tag = 'scoped memory for tpu_custom_call.1']
    #allocation4 [shape = 's32[2]{0}', space=sflag, size = 0x8, scoped, tag = 'scoped memory for tpu_custom_call.1']
    #allocation5 [shape = 'u8[2048]{0}', space=vmem, size = 0x800, scoped, tag = 'output window, operand 0']
    #allocation6 [shape = 'u8[2048]{0}', space=vmem, size = 0x800, scoped, tag = 'output window, operand 1']
    #allocation7 [shape = 's32[2]{0}', space=sflag, size = 0x8, scoped, tag = 'scoped memory for tpu_custom_call.1']
    %10 = vsyncpa [#allocation3], 0
    %s11 = scalar_lea.sflag [#allocation3], 1
    %12 = vsyncpa %s11, 0
    %13 = vsyncpa [#allocation4], 0
    %s14 = scalar_lea.sflag [#allocation4], 1
    %15 = vsyncpa %s14, 0
    %16 = vsyncpa [#allocation7], 0
    %s17 = scalar_lea.sflag [#allocation7], 1
    %18 = vsyncpa %s17, 0
    loop: start=0, step=1, limit=4
    $region2: #{tpu_custom_call.1} parent=1 // loop_pre_header
      _
    $region3: #{tpu_custom_call.1} parent=1 // loop_header
      %s20 = sphi 0, %s24
      %p21 = scmp.ge.s32.totalorder %s20, 4
      %s27 = sphi 0, %s39
      %s28 = sphi 0, %s35
      %s29 = sphi 0, %s27
      %s30 = sphi 0, %s28
      %s31 = sphi 0, %s29
      %s32 = sphi 0, %s30
      %s40 = sphi 0, %s40
      %s42 = sphi 0, %s40
      %s43 = sphi 0, %s42
      %s57 = sphi 0, %s43
      %s65 = sphi 0, %s67
      %s68 = sphi 0, %s65
      %s69 = sphi 0, %s68
      %s85 = sphi 0, %s69
      %s93 = sphi 0, %s95
      %s96 = sphi 0, %s93
      %s97 = sphi 0, %s96
      %s113 = sphi 0, %s97
      %s121 = sphi 0, %s123
      %s124 = sphi 0, %s121
      %s125 = sphi 0, %s124
      %s141 = sphi 0, %s125
      %s149 = sphi 0, %s151
      %s152 = sphi 0, %s149
      %s153 = sphi 0, %s152
      %s169 = sphi 0, %s153
    $region4: #{tpu_custom_call.1} parent=1 // loop_header_branch
      %23 = sbr.rel (%p21) target = $region8
    $region5: #{tpu_custom_call.1} parent=1 // loop_body
      %s25 = ssub.s32 %s20, 1
      %s26 = ssub.s32 %s20, 2
      %s33 = sadd.s32 1, %s28
      %p34 = scmp.ge.s32.totalorder %s33, 2
      %s35 = scalar_select %p34, 0, %s33
      %s36 = sadd.s32 1, %s27
      %s37 = scalar_select %p34, %s36, %s27
      %p38 = scmp.ge.s32.totalorder %s37, 1
      %s39 = scalar_select %p38, 0, %s37
      %s41 = sadd.s32 %s40, 1
      %p44 = scmp.eq.s32.totalorder %s20, 1
      %p45 = scmp.ne.s32.totalorder %s40, %s42
      %p46 = scmp.eq.s32.totalorder %s20, 0
      %p47 = por %p45, %p46
      %p48 = scmp.ne.s32.totalorder %s40, %s42
      %p49 = scmp.eq.s32.totalorder %s25, 1
      %p50 = por %p48, %p49
      %p51 = scmp.ne.s32.totalorder %s42, %s43
      %p52 = scmp.eq.s32.totalorder %s25, 0
      %p53 = por %p51, %p52
      %p54 = scmp.ne.s32.totalorder %s42, %s43
      %p55 = scmp.eq.s32.totalorder %s26, 1
      %p56 = por %p54, %p55
      %p58 = scmp.ne.s32.totalorder %s43, %s57
      %p59 = scmp.eq.s32.totalorder %s26, 0
      %p60 = por %p58, %p59
      %s61 = ssub.s32 %s28, %s35
      %s62 = ssub.s32 %s27, %s39
      %s63 = sor.u32 %s61, %s62
      %p64 = scmp.eq.s32.totalorder %s63, 0
      %s66 = sadd.s32 %s65, 1
      %s67 = scalar_select %p64, %s65, %s66
      %p70 = pneg %p64
      %p71 = scmp.eq.s32.totalorder %s20, 1
      %p72 = por %p70, %p71
      %p73 = scmp.ne.s32.totalorder %s65, %s68
      %p74 = scmp.eq.s32.totalorder %s20, 0
      %p75 = por %p73, %p74
      %p76 = scmp.ne.s32.totalorder %s65, %s68
      %p77 = scmp.eq.s32.totalorder %s25, 1
      %p78 = por %p76, %p77
      %p79 = scmp.ne.s32.totalorder %s68, %s69
      %p80 = scmp.eq.s32.totalorder %s25, 0
      %p81 = por %p79, %p80
      %p82 = scmp.ne.s32.totalorder %s68, %s69
      %p83 = scmp.eq.s32.totalorder %s26, 1
      %p84 = por %p82, %p83
      %p86 = scmp.ne.s32.totalorder %s69, %s85
      %p87 = scmp.eq.s32.totalorder %s26, 0
      %p88 = por %p86, %p87
      %s89 = ssub.s32 %s28, %s35
      %s90 = ssub.s32 %s27, %s39
      %s91 = sor.u32 %s89, %s90
      %p92 = scmp.eq.s32.totalorder %s91, 0
      %s94 = sadd.s32 %s93, 1
      %s95 = scalar_select %p92, %s93, %s94
      %p98 = pneg %p92
      %p99 = scmp.eq.s32.totalorder %s20, 1
      %p100 = por %p98, %p99
      %p101 = scmp.ne.s32.totalorder %s93, %s96
      %p102 = scmp.eq.s32.totalorder %s20, 0
      %p103 = por %p101, %p102
      %p104 = scmp.ne.s32.totalorder %s93, %s96
      %p105 = scmp.eq.s32.totalorder %s25, 1
      %p106 = por %p104, %p105
      %p107 = scmp.ne.s32.totalorder %s96, %s97
      %p108 = scmp.eq.s32.totalorder %s25, 0
      %p109 = por %p107, %p108
      %p110 = scmp.ne.s32.totalorder %s96, %s97
      %p111 = scmp.eq.s32.totalorder %s26, 1
      %p112 = por %p110, %p111
      %p114 = scmp.ne.s32.totalorder %s97, %s113
      %p115 = scmp.eq.s32.totalorder %s26, 0
      %p116 = por %p114, %p115
      %s117 = ssub.s32 %s28, %s35
      %s118 = ssub.s32 %s27, %s39
      %s119 = sor.u32 %s117, %s118
      %p120 = scmp.eq.s32.totalorder %s119, 0
      %s122 = sadd.s32 %s121, 1
      %s123 = scalar_select %p120, %s121, %s122
      %p126 = pneg %p120
      %p127 = scmp.eq.s32.totalorder %s20, 1
      %p128 = por %p126, %p127
      %p129 = scmp.ne.s32.totalorder %s121, %s124
      %p130 = scmp.eq.s32.totalorder %s20, 0
      %p131 = por %p129, %p130
      %p132 = scmp.ne.s32.totalorder %s121, %s124
      %p133 = scmp.eq.s32.totalorder %s25, 1
      %p134 = por %p132, %p133
      %p135 = scmp.ne.s32.totalorder %s124, %s125
      %p136 = scmp.eq.s32.totalorder %s25, 0
      %p137 = por %p135, %p136
      %p138 = scmp.ne.s32.totalorder %s124, %s125
      %p139 = scmp.eq.s32.totalorder %s26, 1
      %p140 = por %p138, %p139
      %p142 = scmp.ne.s32.totalorder %s125, %s141
      %p143 = scmp.eq.s32.totalorder %s26, 0
      %p144 = por %p142, %p143
      %s145 = ssub.s32 %s28, %s35
      %s146 = ssub.s32 %s27, %s39
      %s147 = sor.u32 %s145, %s146
      %p148 = scmp.eq.s32.totalorder %s147, 0
      %s150 = sadd.s32 %s149, 1
      %s151 = scalar_select %p148, %s149, %s150
      %p154 = pneg %p148
      %p155 = scmp.eq.s32.totalorder %s20, 1
      %p156 = por %p154, %p155
      %p157 = scmp.ne.s32.totalorder %s149, %s152
      %p158 = scmp.eq.s32.totalorder %s20, 0
      %p159 = por %p157, %p158
      %p160 = scmp.ne.s32.totalorder %s149, %s152
      %p161 = scmp.eq.s32.totalorder %s25, 1
      %p162 = por %p160, %p161
      %p163 = scmp.ne.s32.totalorder %s152, %s153
      %p164 = scmp.eq.s32.totalorder %s25, 0
      %p165 = por %p163, %p164
      %p166 = scmp.ne.s32.totalorder %s152, %s153
      %p167 = scmp.eq.s32.totalorder %s26, 1
      %p168 = por %p166, %p167
      %p170 = scmp.ne.s32.totalorder %s153, %s169
      %p171 = scmp.eq.s32.totalorder %s26, 0
      %p172 = por %p170, %p171
      %p173 = scmp.le.s32.totalorder 1, %s20
      %p174 = scmp.lt.s32.totalorder %s20, 3
      %p175 = pnand %p173, %p174
      %p176 = pneg %p175
      // Predicated region
      $region9: #{tpu_custom_call.1} parent=5 // pred_check
        _
      $region10: #{tpu_custom_call.1} parent=5 // pred_check_branch
        %178 = sbr.rel (%p175) target = $region12
      $region11: #{tpu_custom_call.1} parent=5 // pred_region
        %s179 = ssub.s32 %s20, 1
        // Predicated region
        $region13: #{tpu_custom_call.1} parent=11 // pred_check
          %p180 = pneg %p53
        $region14: #{tpu_custom_call.1} parent=11 // pred_check_branch
          %182 = sbr.rel (%p180) target = $region16
        $region15: #{tpu_custom_call.1} parent=11 // pred_region
          _
        $region16: #{tpu_custom_call.1} parent=11 // pred_fallthru
          _
      $region12: #{tpu_custom_call.1} parent=5 // pred_fallthru
        _
      %p183 = scmp.lt.s32.totalorder %s20, 2
      // Predicated region
      $region17: #{tpu_custom_call.1} parent=5 // pred_check
        %p184 = pneg %p183
      $region18: #{tpu_custom_call.1} parent=5 // pred_check_branch
        %186 = sbr.rel (%p184) target = $region20
      $region19: #{tpu_custom_call.1} parent=5 // pred_region
        // Predicated region
        $region21: #{tpu_custom_call.1} parent=19 // pred_check
          %p187 = pneg %p75
        $region22: #{tpu_custom_call.1} parent=19 // pred_check_branch
          %189 = sbr.rel (%p187) target = $region24
        $region23: #{tpu_custom_call.1} parent=19 // pred_region
          %s190 = sand.u32 %s65, 1
          %s191 = scalar_lea.sflag [#allocation3], %s190
          %s192 = sand.u32 %s65, 1
          %s193 = smul.addr %s192, 8
          %s194 = scalar_lea.vmem [#allocation2], %s193
          %s195 = smul.u32 2, %s27
          %197 = vsyncadd %s191, 0
          %s198 = smul.addr %s28, 2
          %s199 = sadd.s32 %s195, %s198
          %s200 = smul.addr %s199, 4
          %s201 = scalar_lea.hbm %s1, %s200
          %s203 = sshll.u32 %s201, 4
          %s204 = int_to_ptr.hbm [resolvable:$true] %s203
          %s205 = sshll.u32 %s194, 4
          %s206 = int_to_ptr.vmem [resolvable:$true] %s205
          %208 = dma.hbm_to_vmem [thread:$0]  %s204, 128, %s206, %s191
        $region24: #{tpu_custom_call.1} parent=19 // pred_fallthru
          _
        // Predicated region
        $region25: #{tpu_custom_call.1} parent=19 // pred_check
          %p209 = pneg %p103
        $region26: #{tpu_custom_call.1} parent=19 // pred_check_branch
          %211 = sbr.rel (%p209) target = $region28
        $region27: #{tpu_custom_call.1} parent=19 // pred_region
          %s212 = smul.u32 2, %s27
          %p213 = scmp.lt.s32.totalorder %s28, 1
          %s214 = scalar_select %p213, %s28, 1
          %p215 = scmp.lt.s32.totalorder %s212, 1
          %s216 = scalar_select %p215, %s212, 1
          %s217 = smul.addr %s214, 2
          %s218 = sadd.s32 %s216, %s217
          %s219 = scalar_lea.vmem %s2, %s218
          %s220 = smul.u32 2, %s27
        $region28: #{tpu_custom_call.1} parent=19 // pred_fallthru
          _
      $region20: #{tpu_custom_call.1} parent=5 // pred_fallthru
        _
      %p221 = scmp.le.s32.totalorder 1, %s20
      %p222 = scmp.lt.s32.totalorder %s20, 3
      %p223 = pnand %p221, %p222
      %p224 = pneg %p223
      // Predicated region
      $region29: #{tpu_custom_call.1} parent=5 // pred_check
        _
      $region30: #{tpu_custom_call.1} parent=5 // pred_check_branch
        %226 = sbr.rel (%p223) target = $region32
      $region31: #{tpu_custom_call.1} parent=5 // pred_region
        %s227 = ssub.s32 %s20, 1
        %s228 = sand.u32 %s68, 1
        %s229 = scalar_lea.sflag [#allocation3], %s228
        %s230 = sand.u32 %s68, 1
        %s231 = smul.addr %s230, 8
        %s232 = scalar_lea.vmem [#allocation2], %s231
        // Predicated region
        $region33: #{tpu_custom_call.1} parent=31 // pred_check
          %p233 = pneg %p81
        $region34: #{tpu_custom_call.1} parent=31 // pred_check_branch
          %235 = sbr.rel (%p233) target = $region36
        $region35: #{tpu_custom_call.1} parent=31 // pred_region
          %237 = dma.done %s229, 128
        $region36: #{tpu_custom_call.1} parent=31 // pred_fallthru
          _
        %p238 = pneg %p53
        %p239 = pneg %p50
        %s240 = sand.u32 %s68, 1
        %s241 = scalar_lea.sflag [#allocation3], %s240
        %s242 = sand.u32 %s68, 1
        %s243 = smul.addr %s242, 8
        %s244 = scalar_lea.vmem [#allocation2], %s243
        %p245 = pneg %p81
        %p246 = pneg %p78
        %s247 = smul.u32 2, %s29
        %p248 = scmp.lt.s32.totalorder %s30, 1
        %s249 = scalar_select %p248, %s30, 1
        %p250 = scmp.lt.s32.totalorder %s247, 1
        %s251 = scalar_select %p250, %s247, 1
        %s252 = smul.addr %s249, 2
        %s253 = sadd.s32 %s251, %s252
        %s254 = scalar_lea.vmem %s2, %s253
        %p255 = pneg %p109
        %p256 = pneg %p106
        %p257 = pneg %p137
        %p258 = pneg %p134
        %s259 = sand.u32 %s124, 1
        %s260 = scalar_lea.sflag [#allocation4], %s259
        %s261 = sand.u32 %s124, 1
        %s262 = smul.addr %s261, 2
        %s263 = scalar_lea.vmem [#allocation5], %s262
        %p264 = pneg %p165
        %p265 = pneg %p162
        %s266 = sand.u32 %s152, 1
        %s267 = scalar_lea.sflag [#allocation7], %s266
        %s268 = sand.u32 %s152, 1
        %s269 = smul.addr %s268, 2
        %s270 = scalar_lea.vmem [#allocation6], %s269
        %s271 = smul.u32 2, %s29
        %s272 = smul.u32 2, %s29
        %p273 = scmp.lt.s32.totalorder %s30, 1
        %s274 = scalar_select %p273, %s30, 1
        %p275 = scmp.lt.s32.totalorder %s272, 1
        %s276 = scalar_select %p275, %s272, 1
        %s277 = smul.addr %s274, 2
        %s278 = sadd.s32 %s276, %s277
        %s279 = scalar_lea.vmem %s2, %s278
        %s280 = smul.u32 2, %s29
        %s281 = smul.u32 2, %s29
        %s282 = smul.u32 2, %s29
        %v283 = vld [vmem:[%s232] sm:$0xff]
        %v284 = vld [vmem:[%s279] sm:$0x3]
        %vm285 = vcmp.ne.s32.totalorder %v284, 255
        %v286 = vsel %vm285, %v284, 0
        %v287 = vlaneseq
        %v288 = vshrl.u32 %v287, 7
        %v289 = vperm.slane %v286, 0
        %v290 = vperm.slane %v286, 1
        %vm291 = vcmp.eq.s32.totalorder %v288, %v289
        %vm292 = vcmp.eq.s32.totalorder %v288, %v290
        %v293 = vsel %vm291, 1, 0
        %v294 = vsel %vm292, 1, 0
        %v295 = vcvt.s32.f32 %v293
        %v296 = vcvt.s32.f32 %v294
        %298 = vst [vmem:[#allocation1] ss:$2 sm:$0xff] %v283
        %v299 = vld.sshfl [vmem:[#allocation1] sm:$0xff pattern:$0x75316420]
        %v300 = vld.sshfl [vmem:[#allocation1 + $0x8] sm:$0xff pattern:$0x75316420]
        %vm303 = vcmask 1043456
        %v304 = vsel %vm303, %v299, -inf
        %v305 = vrot.slane %v304, 4
        %v306 = vmax.f32 %v304, %v305
        %v307 = vrot.slane %v306, 2
        %v308 = vmax.f32 %v306, %v307
        %v309 = vrot.slane %v308, 1
        %v310 = vmax.f32 %v308, %v309
        %v311 = vsel %vm303, %v300, -inf
        %v312 = vrot.slane %v311, 4
        %v313 = vmax.f32 %v311, %v312
        %v314 = vrot.slane %v313, 2
        %v315 = vmax.f32 %v313, %v314
        %v316 = vrot.slane %v315, 1
        %v317 = vmax.f32 %v315, %v316
        %v320 = vrot.slane %v317, 4
        %v321 = vsel %vm303, %v310, %v320
        %v323 = vsub.f32 %v283, %v321
        %v324 = vmul.f32 %v323, 1.442695
        %v325 = vpow.pop %v324
        %327 = vst [vmem:[#allocation1] ss:$2 sm:$0xff] %v325
        %v328 = vld.sshfl [vmem:[#allocation1] sm:$0xff pattern:$0x75316420]
        %v329 = vld.sshfl [vmem:[#allocation1 + $0x8] sm:$0xff pattern:$0x75316420]
        %v332 = vsel %vm303, %v328, 0.0
        %v333 = vrot.slane %v332, 4
        %v334 = vadd.f32 %v332, %v333
        %v335 = vrot.slane %v334, 2
        %v336 = vadd.f32 %v334, %v335
        %v337 = vrot.slane %v336, 1
        %v338 = vadd.f32 %v336, %v337
        %v339 = vsel %vm303, %v329, 0.0
        %v340 = vrot.slane %v339, 4
        %v341 = vadd.f32 %v339, %v340
        %v342 = vrot.slane %v341, 2
        %v343 = vadd.f32 %v341, %v342
        %v344 = vrot.slane %v343, 1
        %v345 = vadd.f32 %v343, %v344
        %v348 = vrot.slane %v296, 4
        %v349 = vsel %vm303, %v295, %v348
        %v351 = vmul.f32 %v283, %v349
        %353 = vst [vmem:[#allocation1] ss:$2 sm:$0xff] %v351
        %v354 = vld.sshfl [vmem:[#allocation1] sm:$0xff pattern:$0x75316420]
        %v355 = vld.sshfl [vmem:[#allocation1 + $0x8] sm:$0xff pattern:$0x75316420]
        %v358 = vsel %vm303, %v354, 0.0
        %v359 = vrot.slane %v358, 4
        %v360 = vadd.f32 %v358, %v359
        %v361 = vrot.slane %v360, 2
        %v362 = vadd.f32 %v360, %v361
        %v363 = vrot.slane %v362, 1
        %v364 = vadd.f32 %v362, %v363
        %v365 = vsel %vm303, %v355, 0.0
        %v366 = vrot.slane %v365, 4
        %v367 = vadd.f32 %v365, %v366
        %v368 = vrot.slane %v367, 2
        %v369 = vadd.f32 %v367, %v368
        %v370 = vrot.slane %v369, 1
        %v371 = vadd.f32 %v369, %v370
        %v372 = vsub.f32 %v364, %v310
        %v373 = vsub.f32 %v371, %v317
        %v374 = vlog2.pop %v338
        %v375 = vmul.f32 %v374, 0.6931472
        %v376 = vlog2.pop %v345
        %v377 = vmul.f32 %v376, 0.6931472
        %v378 = vsub.f32 %v372, %v375
        %v379 = vsub.f32 %v373, %v377
        %v380 = vmul.f32 %v378, 1.442695
        %v381 = vpow.pop %v380
        %v382 = vmul.f32 %v379, 1.442695
        %v383 = vpow.pop %v382
        %v384 = vld [vmem:[%s0] sm:$0xf]
        %386 = vset.pattern.permute.xlu0 0
        %387 = vperm.xlu0 %386, %v384
        %v388 = vpop.permute.xlu0 %387
        %v390 = vmul.f32 %v388, %v295
        %v391 = vmul.f32 %v388, %v296
        %v392 = vsel %vm303, %v390, 0.0
        %v393 = vrot.slane %v392, 4
        %v394 = vadd.f32 %v392, %v393
        %v395 = vrot.slane %v394, 2
        %v396 = vadd.f32 %v394, %v395
        %v397 = vrot.slane %v396, 1
        %v398 = vadd.f32 %v396, %v397
        %v399 = vsel %vm303, %v391, 0.0
        %v400 = vrot.slane %v399, 4
        %v401 = vadd.f32 %v399, %v400
        %v402 = vrot.slane %v401, 2
        %v403 = vadd.f32 %v401, %v402
        %v404 = vrot.slane %v403, 1
        %v405 = vadd.f32 %v403, %v404
        %v408 = vrot.slane %v383, 7
        %vm409 = vcmask 1040384
        %v410 = vsel %vm409, %v381, %v408
        %v412 = vsel %vm285, %v410, inf
        %v413 = vlaneseq
        %vm414 = vcmp.ge.s32.totalorder %v413, 0
        %vm415 = vcmp.lt.s32.totalorder %v413, 256
        %vm416 = vmand %vm414, %vm415
        %417 = vst.msk [vmem:[%s263] sm:$0x3] %vm416, %v412
        %v418 = vsub.f32 0.0, %v398
        %v419 = vsub.f32 0.0, %v405
        %v420 = vmul.f32 %v418, %v378
        %v421 = vmul.f32 %v419, %v379
        %v424 = vrot.slane %v421, 7
        %v425 = vsel %vm409, %v420, %v424
        %v427 = vsel %vm285, %v425, 0.0
        %428 = vst.msk [vmem:[%s270] sm:$0x3] %vm416, %v427
        %s429 = sand.u32 %s124, 1
        %s430 = scalar_lea.sflag [#allocation4], %s429
        %s431 = sand.u32 %s124, 1
        %s432 = smul.addr %s431, 2
        %s433 = scalar_lea.vmem [#allocation5], %s432
        %s434 = sand.u32 %s152, 1
        %s435 = scalar_lea.sflag [#allocation7], %s434
        %s436 = sand.u32 %s152, 1
        %s437 = smul.addr %s436, 2
        %s438 = scalar_lea.vmem [#allocation6], %s437
        // Predicated region
        $region37: #{tpu_custom_call.1} parent=31 // pred_check
          %p439 = pneg %p134
        $region38: #{tpu_custom_call.1} parent=31 // pred_check_branch
          %441 = sbr.rel (%p439) target = $region40
        $region39: #{tpu_custom_call.1} parent=31 // pred_region
          %s442 = smul.u32 2, %s29
          %444 = vsyncadd %s430, 0
          %s445 = smul.addr %s30, 2
          %s446 = sadd.s32 %s442, %s445
          %s447 = scalar_lea.hbm %s3, %s446
          %s449 = sshll.u32 %s433, 4
          %s450 = int_to_ptr.vmem [resolvable:$true] %s449
          %s451 = sshll.u32 %s447, 4
          %s452 = int_to_ptr.hbm [resolvable:$true] %s451
          %454 = dma.vmem_to_hbm [thread:$0]  %s450, 32, %s452, %s430
        $region40: #{tpu_custom_call.1} parent=31 // pred_fallthru
          _
        // Predicated region
        $region41: #{tpu_custom_call.1} parent=31 // pred_check
          %p455 = pneg %p162
        $region42: #{tpu_custom_call.1} parent=31 // pred_check_branch
          %457 = sbr.rel (%p455) target = $region44
        $region43: #{tpu_custom_call.1} parent=31 // pred_region
          %s458 = smul.u32 2, %s29
          %460 = vsyncadd %s435, 0
          %s461 = smul.addr %s30, 2
          %s462 = sadd.s32 %s458, %s461
          %s463 = scalar_lea.hbm %s4, %s462
          %s465 = sshll.u32 %s438, 4
          %s466 = int_to_ptr.vmem [resolvable:$true] %s465
          %s467 = sshll.u32 %s463, 4
          %s468 = int_to_ptr.hbm [resolvable:$true] %s467
          %470 = dma.vmem_to_hbm [thread:$0]  %s466, 32, %s468, %s435
        $region44: #{tpu_custom_call.1} parent=31 // pred_fallthru
          _
      $region32: #{tpu_custom_call.1} parent=5 // pred_fallthru
        _
      %p471 = scmp.le.s32.totalorder 2, %s20
      // Predicated region
      $region45: #{tpu_custom_call.1} parent=5 // pred_check
        %p472 = pneg %p471
      $region46: #{tpu_custom_call.1} parent=5 // pred_check_branch
        %474 = sbr.rel (%p472) target = $region48
      $region47: #{tpu_custom_call.1} parent=5 // pred_region
        %s475 = ssub.s32 %s20, 2
        // Predicated region
        $region49: #{tpu_custom_call.1} parent=47 // pred_check
          %p476 = pneg %p140
        $region50: #{tpu_custom_call.1} parent=47 // pred_check_branch
          %478 = sbr.rel (%p476) target = $region52
        $region51: #{tpu_custom_call.1} parent=47 // pred_region
          %s479 = sand.u32 %s125, 1
          %s480 = scalar_lea.sflag [#allocation4], %s479
          %s481 = sand.u32 %s125, 1
          %s482 = smul.addr %s481, 2
          %s483 = scalar_lea.vmem [#allocation5], %s482
          %485 = dma.done %s480, 32
        $region52: #{tpu_custom_call.1} parent=47 // pred_fallthru
          _
        // Predicated region
        $region53: #{tpu_custom_call.1} parent=47 // pred_check
          %p486 = pneg %p168
        $region54: #{tpu_custom_call.1} parent=47 // pred_check_branch
          %488 = sbr.rel (%p486) target = $region56
        $region55: #{tpu_custom_call.1} parent=47 // pred_region
          %s489 = sand.u32 %s153, 1
          %s490 = scalar_lea.sflag [#allocation7], %s489
          %s491 = sand.u32 %s153, 1
          %s492 = smul.addr %s491, 2
          %s493 = scalar_lea.vmem [#allocation6], %s492
          %495 = dma.done %s490, 32
        $region56: #{tpu_custom_call.1} parent=47 // pred_fallthru
          _
      $region48: #{tpu_custom_call.1} parent=5 // pred_fallthru
        _
    $region6: #{tpu_custom_call.1} parent=1 // loop_footer
      %s24 = sadd.s32 1, %s20
    $region7: #{tpu_custom_call.1} parent=1 // loop_footer_branch
      %19 = sbr.rel target = $region3
    $region8: #{tpu_custom_call.1} parent=1 // loop_exit
      _
    %496 = vsyncpa [#allocation3], 1
    %s497 = scalar_lea.sflag [#allocation3], 1
    %498 = vsyncpa %s497, 1
    %499 = vsyncpa [#allocation4], 1
    %s500 = scalar_lea.sflag [#allocation4], 1
    %501 = vsyncpa %s500, 1
    %502 = vsyncpa [#allocation7], 1
    %s503 = scalar_lea.sflag [#allocation7], 1
    %504 = vsyncpa %s503, 1

</llo_original>
